<compile_context>
chip_gen: v6e
topology: v6e:2x2x1
jax: 0.10.0
libtpu: 0.0.40
codegen_flags: <defaults>
</compile_context>

<pallas_src>
import math
import jax
import jax.numpy as jnp
from jax.experimental import pallas as pl
from jax.experimental.pallas import tpu as pltpu


# ----------------------------------------------------------------------------------
# Pallas kernel: the full post-embedding compute graph of BotSpot.forward
#   dev_conv    = dev_linear1(neibr_mean)                 (== dev_linear1(neibr).mean(1))
#   device_out  = relu(dev_linear2(relu(dev_linear1(device_feats))))     (dropout = id)
#   channel_conv= channel_linear1(combin_feats)
#   fuse_conv   = relu(fusion_linear1(cat(channel_conv, dev_conv)))      (dropout = id)
#   h           = L3(relu(L2(relu(L1(cat(fuse_conv, device_out))))))
#   out         = sigmoid(h)
# ----------------------------------------------------------------------------------
def botspot_kernel(combin_ref, device_ref, nmean_ref,
                   w_dev1_ref, b_dev1_ref,
                   w_dev2_ref, b_dev2_ref,
                   w_chan_ref, b_chan_ref,
                   w_fuse_c_ref, w_fuse_d_ref, b_fuse_ref,
                   w_c1_f_ref, w_c1_d_ref, b_c1_ref,
                   w_c2_ref, b_c2_ref,
                   w_c3_ref, b_c3_ref,
                   out_ref):
    f32 = jnp.float32

    # --- neighbour conv (mean taken in wrapper; exact by linearity of Linear) ---
    dev_conv = (jnp.dot(nmean_ref[...], w_dev1_ref[...], preferred_element_type=f32)
                + b_dev1_ref[...])

    # --- device tower (dropout is identity in eval mode) ---
    d1 = jnp.maximum(
        jnp.dot(device_ref[...], w_dev1_ref[...], preferred_element_type=f32)
        + b_dev1_ref[...], 0.0)
    device_out = jnp.maximum(
        jnp.dot(d1, w_dev2_ref[...], preferred_element_type=f32) + b_dev2_ref[...], 0.0)

    # --- channel conv ---
    channel_conv = (jnp.dot(combin_ref[...], w_chan_ref[...], preferred_element_type=f32)
                    + b_chan_ref[...])

    # --- fusion: relu(fusion_linear1(cat(channel_conv, dev_conv))) ---
    fuse_conv = jnp.maximum(
        jnp.dot(channel_conv, w_fuse_c_ref[...], preferred_element_type=f32)
        + jnp.dot(dev_conv, w_fuse_d_ref[...], preferred_element_type=f32)
        + b_fuse_ref[...], 0.0)

    # --- head: L3(relu(L2(relu(L1(cat(fuse_conv, device_out)))))) ---
    h1_in = jnp.maximum(
        jnp.dot(fuse_conv, w_c1_f_ref[...], preferred_element_type=f32)
        + jnp.dot(device_out, w_c1_d_ref[...], preferred_element_type=f32)
        + b_c1_ref[...], 0.0)
    h1 = jnp.dot(h1_in, w_c2_ref[...], preferred_element_type=f32) + b_c2_ref[...]
    h2 = jnp.maximum(h1, 0.0)
    h = jnp.dot(h2, w_c3_ref[...], preferred_element_type=f32) + b_c3_ref[...]

    out_ref[...] = jax.nn.sigmoid(h)


def _round_up(x, m):
    return (x + m - 1) // m * m


def botspot_pallas(combin_emb, device_emb, neibr_emb, p, *, block_b=512):
    """combin_emb: (B, Dc), device_emb: (B, Dd), neibr_emb: (B, S, Dd)."""
    B = combin_emb.shape[0]

    # Algebraic simplification (exact): Linear(x).mean(1) == Linear(x.mean(1)).
    # Taking the mean here (fused with the gather by XLA) removes the 100x-larger
    # neighbour tensor from the kernel's inputs entirely.
    neibr_mean = jnp.mean(neibr_emb.astype(jnp.float32), axis=1)

    # Batch tile: multiple of 8 (sublane), capped at block_b; pad batch to a multiple.
    tb = min(block_b, _round_up(B, 8))
    pb = _round_up(B, tb)

    def pad_rows(x):
        x = x.astype(jnp.float32)
        if x.shape[0] == pb:
            return x
        return jnp.pad(x, ((0, pb - x.shape[0]), (0, 0)))

    combin_p = pad_rows(combin_emb)
    device_p = pad_rows(device_emb)
    nmean_p = pad_rows(neibr_mean)

    def act_spec(d):
        return pl.BlockSpec((tb, d), lambda i: (i, 0))

    def resident_spec(a):
        # Constant block index -> weight stays resident in VMEM across all grid steps.
        return pl.BlockSpec(a.shape, lambda i: (0, 0))

    weights = (p['w_dev1'], p['b_dev1'],
               p['w_dev2'], p['b_dev2'],
               p['w_chan'], p['b_chan'],
               p['w_fuse_c'], p['w_fuse_d'], p['b_fuse'],
               p['w_c1_f'], p['w_c1_d'], p['b_c1'],
               p['w_c2'], p['b_c2'],
               p['w_c3'], p['b_c3'])

    in_specs = ([act_spec(combin_p.shape[1]),
                 act_spec(device_p.shape[1]),
                 act_spec(nmean_p.shape[1])]
                + [resident_spec(w) for w in weights])

    out = pl.pallas_call(
        botspot_kernel,
        out_shape=jax.ShapeDtypeStruct((pb, 1), jnp.float32),
        grid=(pb // tb,),
        in_specs=in_specs,
        out_specs=pl.BlockSpec((tb, 1), lambda i: (i, 0)),
        compiler_params=pltpu.CompilerParams(
            dimension_semantics=("parallel",)),
    )(combin_p, device_p, nmean_p, *weights)
    return out[:B]


# ----------------------------------------------------------------------------------
# Plain-JAX reference (mirrors the PyTorch forward) for a sanity check.
# ----------------------------------------------------------------------------------
def botspot_ref(combin_emb, device_emb, neibr_emb, p):
    def lin(x, w, b):
        return x @ w + b
    nb_h = lin(neibr_emb, p['w_dev1'], p['b_dev1'])           # (B, S, dd1)
    dev_conv = jnp.mean(nb_h, axis=1)
    d1 = jax.nn.relu(lin(device_emb, p['w_dev1'], p['b_dev1']))
    device_out = jax.nn.relu(lin(d1, p['w_dev2'], p['b_dev2']))
    channel_conv = lin(combin_emb, p['w_chan'], p['b_chan'])
    fuse_conv = jax.nn.relu(
        jnp.concatenate([channel_conv, dev_conv], axis=1)
        @ jnp.concatenate([p['w_fuse_c'], p['w_fuse_d']], axis=0) + p['b_fuse'])
    h1_in = jax.nn.relu(
        jnp.concatenate([fuse_conv, device_out], axis=1)
        @ jnp.concatenate([p['w_c1_f'], p['w_c1_d']], axis=0) + p['b_c1'])
    h1 = lin(h1_in, p['w_c2'], p['b_c2'])
    h = lin(jax.nn.relu(h1), p['w_c3'], p['b_c3'])
    return jax.nn.sigmoid(h)


# ----------------------------------------------------------------------------------
# Glue: deterministic parameter init + embedding lookups (concat_combin/device_feats)
# ----------------------------------------------------------------------------------
def linear_params(key, in_dim, out_dim):
    k1, k2 = jax.random.split(key)
    bound = 1.0 / math.sqrt(in_dim)
    w = jax.random.uniform(k1, (in_dim, out_dim), jnp.float32, -bound, bound)
    b = jax.random.uniform(k2, (1, out_dim), jnp.float32, -bound, bound)
    return w, b


def concat_combin_feats(combin_rows, chan_emb):
    # combin_rows: (N, C_combin) float, last column is channel id
    num = combin_rows[:, :-1]
    ids = combin_rows[:, -1].astype(jnp.int32)
    return jnp.concatenate([num, jnp.take(chan_emb, ids, axis=0)], axis=1)


def concat_device_feats(dev_rows, dev_emb_tables):
    # dev_rows: (N, 8) float = [numeric, lang, plat, os, country, carrier, brand, plat_os]
    parts = [dev_rows[:, :1]]
    for i, tbl in enumerate(dev_emb_tables):
        ids = dev_rows[:, 1 + i].astype(jnp.int32)
        parts.append(jnp.take(tbl, ids, axis=0))
    return jnp.concatenate(parts, axis=1)


if __name__ == "__main__":
    key = jax.random.PRNGKey(0)
    ks = iter(jax.random.split(key, 64))

    # ---- small synthetic graph data (consistent with BotSpot.__init__) ----
    embed_size = 16
    B = 8                    # minibatch of edges
    S = 100                  # sample_size hard-coded in sample_neibrs_feats
    Nc, Cc = 12, 5           # combin_feats: 4 numeric cols + 1 channel-id col
    Nd = 30                  # device_feats: 1 numeric col + 7 categorical cols
    cat_cards = [5, 3, 4, 6, 4, 7, 5]   # lang, plat, os, country, carrier, brand, plat_os

    combin_num = jax.random.normal(next(ks), (Nc, Cc - 1), jnp.float32)
    combin_ids = jnp.arange(Nc, dtype=jnp.float32)[:, None]
    combin_feats = jnp.concatenate([combin_num, combin_ids], axis=1)        # (Nc, 5)

    dev_num = jax.random.normal(next(ks), (Nd, 1), jnp.float32)
    dev_cats = [jax.random.randint(next(ks), (Nd, 1), 0, c).astype(jnp.float32)
                for c in cat_cards]
    device_feats = jnp.concatenate([dev_num] + dev_cats, axis=1)            # (Nd, 8)

    edges = jnp.stack([jax.random.randint(next(ks), (B,), 0, Nc),
                       jax.random.randint(next(ks), (B,), 0, Nd)], axis=1)  # (B, 2)
    sampled_neibrs = jax.random.randint(next(ks), (B, S), 0, Nd)            # (B, 100)

    # ---- dimensions exactly as in BotSpot.__init__ ----
    combin_feats_dim = combin_feats.shape[1] - 1 + embed_size               # 20
    device_feats_dim = embed_size * (device_feats.shape[1] - 1) + 1         # 113
    dd1 = int(0.6 * device_feats_dim)                                       # 67
    dd2 = int(0.75 * 0.6 * device_feats_dim)                                # 50
    dc1 = int(0.6 * combin_feats_dim)                                       # 12
    fusion_in = dc1 + dd1
    fusion_out = int(0.6 * fusion_in)
    concat_in = fusion_out + dd2
    c1 = int(0.6 * concat_in)
    c2 = int(0.5 * 0.6 * concat_in)

    # ---- embedding tables (deterministic normal init, as nn.Embedding default) ----
    chan_emb = jax.random.normal(next(ks), (Nc, embed_size), jnp.float32)
    dev_emb_tables = [jax.random.normal(next(ks), (c, embed_size), jnp.float32)
                      for c in cat_cards]

    # ---- linear-layer parameters (stored transposed: (in, out)) ----
    params = {}
    params['w_dev1'], params['b_dev1'] = linear_params(next(ks), device_feats_dim, dd1)
    params['w_dev2'], params['b_dev2'] = linear_params(next(ks), dd1, dd2)
    params['w_chan'], params['b_chan'] = linear_params(next(ks), combin_feats_dim, dc1)
    w_fuse, params['b_fuse'] = linear_params(next(ks), fusion_in, fusion_out)
    params['w_fuse_c'], params['w_fuse_d'] = w_fuse[:dc1], w_fuse[dc1:]
    w_c1, params['b_c1'] = linear_params(next(ks), concat_in, c1)
    params['w_c1_f'], params['w_c1_d'] = w_c1[:fusion_out], w_c1[fusion_out:]
    params['w_c2'], params['b_c2'] = linear_params(next(ks), c1, c2)
    params['w_c3'], params['b_c3'] = linear_params(next(ks), c2, 1)

    # ---- glue: gathers + embedding concat (sample_neibrs_feats semantics) ----
    combin_emb = concat_combin_feats(jnp.take(combin_feats, edges[:, 0], axis=0), chan_emb)
    device_emb = concat_device_feats(jnp.take(device_feats, edges[:, 1], axis=0),
                                     dev_emb_tables)
    neibr_rows = jnp.take(device_feats, sampled_neibrs.reshape(-1), axis=0)
    neibr_emb = concat_device_feats(neibr_rows, dev_emb_tables).reshape(B, S,
                                                                        device_feats_dim)

    # ---- run kernel + verify against pure-JAX reference ----
    out = botspot_pallas(combin_emb, device_emb, neibr_emb, params)
    out = jax.block_until_ready(out)
    ref = botspot_ref(combin_emb, device_emb, neibr_emb, params)

    assert out.shape == (B, 1)
    assert bool(jnp.all(jnp.isfinite(out)))
    assert bool(jnp.allclose(out, ref, atol=2e-3, rtol=2e-3)), (out, ref)
    print("KERNEL_OK")
</pallas_src>

<mosaic_0001>
module attributes {stable_mosaic.version = 11 : i64} {
  func.func @botspot_kernel(%arg0: i32, %arg1: memref<8x20xf32, #tpu.memory_space<vmem>>, %arg2: memref<8x113xf32, #tpu.memory_space<vmem>>, %arg3: memref<8x113xf32, #tpu.memory_space<vmem>>, %arg4: memref<113x67xf32, #tpu.memory_space<vmem>>, %arg5: memref<1x67xf32, #tpu.memory_space<vmem>>, %arg6: memref<67x50xf32, #tpu.memory_space<vmem>>, %arg7: memref<1x50xf32, #tpu.memory_space<vmem>>, %arg8: memref<20x12xf32, #tpu.memory_space<vmem>>, %arg9: memref<1x12xf32, #tpu.memory_space<vmem>>, %arg10: memref<12x47xf32, #tpu.memory_space<vmem>>, %arg11: memref<67x47xf32, #tpu.memory_space<vmem>>, %arg12: memref<1x47xf32, #tpu.memory_space<vmem>>, %arg13: memref<47x58xf32, #tpu.memory_space<vmem>>, %arg14: memref<50x58xf32, #tpu.memory_space<vmem>>, %arg15: memref<1x58xf32, #tpu.memory_space<vmem>>, %arg16: memref<58x29xf32, #tpu.memory_space<vmem>>, %arg17: memref<1x29xf32, #tpu.memory_space<vmem>>, %arg18: memref<29x1xf32, #tpu.memory_space<vmem>>, %arg19: memref<1x1xf32, #tpu.memory_space<vmem>>, %arg20: memref<8x1xf32, #tpu.memory_space<vmem>>) attributes {dimension_semantics = [#tpu.dimension_semantics<parallel>], iteration_bounds = array<i64: 1>, scalar_prefetch = 0 : i64, scratch_operands = 0 : i64, tpu.core_type = #tpu.core_type<tc>, window_params = [{transform_indices = @transform_0, window_bounds = array<i64: 8, 20>}, {transform_indices = @transform_1, window_bounds = array<i64: 8, 113>}, {transform_indices = @transform_2, window_bounds = array<i64: 8, 113>}, {pipeline_mode = #tpu.pipeline_mode<synchronous>, transform_indices = @transform_3, window_bounds = array<i64: 113, 67>}, {pipeline_mode = #tpu.pipeline_mode<synchronous>, transform_indices = @transform_4, window_bounds = array<i64: 1, 67>}, {pipeline_mode = #tpu.pipeline_mode<synchronous>, transform_indices = @transform_5, window_bounds = array<i64: 67, 50>}, {pipeline_mode = #tpu.pipeline_mode<synchronous>, transform_indices = @transform_6, window_bounds = array<i64: 1, 50>}, {pipeline_mode = #tpu.pipeline_mode<synchronous>, transform_indices = @transform_7, window_bounds = array<i64: 20, 12>}, {pipeline_mode = #tpu.pipeline_mode<synchronous>, transform_indices = @transform_8, window_bounds = array<i64: 1, 12>}, {pipeline_mode = #tpu.pipeline_mode<synchronous>, transform_indices = @transform_9, window_bounds = array<i64: 12, 47>}, {pipeline_mode = #tpu.pipeline_mode<synchronous>, transform_indices = @transform_10, window_bounds = array<i64: 67, 47>}, {pipeline_mode = #tpu.pipeline_mode<synchronous>, transform_indices = @transform_11, window_bounds = array<i64: 1, 47>}, {pipeline_mode = #tpu.pipeline_mode<synchronous>, transform_indices = @transform_12, window_bounds = array<i64: 47, 58>}, {pipeline_mode = #tpu.pipeline_mode<synchronous>, transform_indices = @transform_13, window_bounds = array<i64: 50, 58>}, {pipeline_mode = #tpu.pipeline_mode<synchronous>, transform_indices = @transform_14, window_bounds = array<i64: 1, 58>}, {pipeline_mode = #tpu.pipeline_mode<synchronous>, transform_indices = @transform_15, window_bounds = array<i64: 58, 29>}, {pipeline_mode = #tpu.pipeline_mode<synchronous>, transform_indices = @transform_16, window_bounds = array<i64: 1, 29>}, {pipeline_mode = #tpu.pipeline_mode<synchronous>, transform_indices = @transform_17, window_bounds = array<i64: 29, 1>}, {pipeline_mode = #tpu.pipeline_mode<synchronous>, transform_indices = @transform_18, window_bounds = array<i64: 1, 1>}, {transform_indices = @transform_19, window_bounds = array<i64: 8, 1>}]} {
    %c0 = arith.constant 0 : index
    %c0_0 = arith.constant 0 : index
    %0 = vector.load %arg3[%c0, %c0_0] : memref<8x113xf32, #tpu.memory_space<vmem>>, vector<8x113xf32>
    %c0_1 = arith.constant 0 : index
    %c0_2 = arith.constant 0 : index
    %1 = vector.load %arg4[%c0_1, %c0_2] : memref<113x67xf32, #tpu.memory_space<vmem>>, vector<113x67xf32>
    %cst = arith.constant dense<0.000000e+00> : vector<8x67xf32>
    %2 = tpu.matmul %0, %1, %cst {dimension_numbers = #tpu.dot_dimension_numbers<[1], [0], [0], [1], [0, 0, 1, 1], [], []>} : vector<8x113xf32>, vector<113x67xf32>, vector<8x67xf32> -> vector<8x67xf32>
    %c0_3 = arith.constant 0 : index
    %c0_4 = arith.constant 0 : index
    %3 = vector.load %arg5[%c0_3, %c0_4] : memref<1x67xf32, #tpu.memory_space<vmem>>, vector<1x67xf32>
    %4 = vector.broadcast %3 : vector<1x67xf32> to vector<8x67xf32>
    %5 = arith.addf %2, %4 : vector<8x67xf32>
    %c0_5 = arith.constant 0 : index
    %c0_6 = arith.constant 0 : index
    %6 = vector.load %arg2[%c0_5, %c0_6] : memref<8x113xf32, #tpu.memory_space<vmem>>, vector<8x113xf32>
    %c0_7 = arith.constant 0 : index
    %c0_8 = arith.constant 0 : index
    %7 = vector.load %arg4[%c0_7, %c0_8] : memref<113x67xf32, #tpu.memory_space<vmem>>, vector<113x67xf32>
    %cst_9 = arith.constant dense<0.000000e+00> : vector<8x67xf32>
    %8 = tpu.matmul %6, %7, %cst_9 {dimension_numbers = #tpu.dot_dimension_numbers<[1], [0], [0], [1], [0, 0, 1, 1], [], []>} : vector<8x113xf32>, vector<113x67xf32>, vector<8x67xf32> -> vector<8x67xf32>
    %c0_10 = arith.constant 0 : index
    %c0_11 = arith.constant 0 : index
    %9 = vector.load %arg5[%c0_10, %c0_11] : memref<1x67xf32, #tpu.memory_space<vmem>>, vector<1x67xf32>
    %10 = vector.broadcast %9 : vector<1x67xf32> to vector<8x67xf32>
    %11 = arith.addf %8, %10 : vector<8x67xf32>
    %cst_12 = arith.constant 0.000000e+00 : f32
    %12 = vector.broadcast %cst_12 : f32 to vector<8x67xf32>
    %13 = arith.maximumf %11, %12 : vector<8x67xf32>
    %c0_13 = arith.constant 0 : index
    %c0_14 = arith.constant 0 : index
    %14 = vector.load %arg6[%c0_13, %c0_14] : memref<67x50xf32, #tpu.memory_space<vmem>>, vector<67x50xf32>
    %cst_15 = arith.constant dense<0.000000e+00> : vector<8x50xf32>
    %15 = tpu.matmul %13, %14, %cst_15 {dimension_numbers = #tpu.dot_dimension_numbers<[1], [0], [0], [1], [0, 0, 1, 1], [], []>} : vector<8x67xf32>, vector<67x50xf32>, vector<8x50xf32> -> vector<8x50xf32>
    %c0_16 = arith.constant 0 : index
    %c0_17 = arith.constant 0 : index
    %16 = vector.load %arg7[%c0_16, %c0_17] : memref<1x50xf32, #tpu.memory_space<vmem>>, vector<1x50xf32>
    %17 = vector.broadcast %16 : vector<1x50xf32> to vector<8x50xf32>
    %18 = arith.addf %15, %17 : vector<8x50xf32>
    %cst_18 = arith.constant 0.000000e+00 : f32
    %19 = vector.broadcast %cst_18 : f32 to vector<8x50xf32>
    %20 = arith.maximumf %18, %19 : vector<8x50xf32>
    %c0_19 = arith.constant 0 : index
    %c0_20 = arith.constant 0 : index
    %21 = vector.load %arg1[%c0_19, %c0_20] : memref<8x20xf32, #tpu.memory_space<vmem>>, vector<8x20xf32>
    %c0_21 = arith.constant 0 : index
    %c0_22 = arith.constant 0 : index
    %22 = vector.load %arg8[%c0_21, %c0_22] : memref<20x12xf32, #tpu.memory_space<vmem>>, vector<20x12xf32>
    %cst_23 = arith.constant dense<0.000000e+00> : vector<8x12xf32>
    %23 = tpu.matmul %21, %22, %cst_23 {dimension_numbers = #tpu.dot_dimension_numbers<[1], [0], [0], [1], [0, 0, 1, 1], [], []>} : vector<8x20xf32>, vector<20x12xf32>, vector<8x12xf32> -> vector<8x12xf32>
    %c0_24 = arith.constant 0 : index
    %c0_25 = arith.constant 0 : index
    %24 = vector.load %arg9[%c0_24, %c0_25] : memref<1x12xf32, #tpu.memory_space<vmem>>, vector<1x12xf32>
    %25 = vector.broadcast %24 : vector<1x12xf32> to vector<8x12xf32>
    %26 = arith.addf %23, %25 : vector<8x12xf32>
    %c0_26 = arith.constant 0 : index
    %c0_27 = arith.constant 0 : index
    %27 = vector.load %arg10[%c0_26, %c0_27] : memref<12x47xf32, #tpu.memory_space<vmem>>, vector<12x47xf32>
    %cst_28 = arith.constant dense<0.000000e+00> : vector<8x47xf32>
    %28 = tpu.matmul %26, %27, %cst_28 {dimension_numbers = #tpu.dot_dimension_numbers<[1], [0], [0], [1], [0, 0, 1, 1], [], []>} : vector<8x12xf32>, vector<12x47xf32>, vector<8x47xf32> -> vector<8x47xf32>
    %c0_29 = arith.constant 0 : index
    %c0_30 = arith.constant 0 : index
    %29 = vector.load %arg11[%c0_29, %c0_30] : memref<67x47xf32, #tpu.memory_space<vmem>>, vector<67x47xf32>
    %cst_31 = arith.constant dense<0.000000e+00> : vector<8x47xf32>
    %30 = tpu.matmul %5, %29, %cst_31 {dimension_numbers = #tpu.dot_dimension_numbers<[1], [0], [0], [1], [0, 0, 1, 1], [], []>} : vector<8x67xf32>, vector<67x47xf32>, vector<8x47xf32> -> vector<8x47xf32>
    %31 = arith.addf %28, %30 : vector<8x47xf32>
    %c0_32 = arith.constant 0 : index
    %c0_33 = arith.constant 0 : index
    %32 = vector.load %arg12[%c0_32, %c0_33] : memref<1x47xf32, #tpu.memory_space<vmem>>, vector<1x47xf32>
    %33 = vector.broadcast %32 : vector<1x47xf32> to vector<8x47xf32>
    %34 = arith.addf %31, %33 : vector<8x47xf32>
    %cst_34 = arith.constant 0.000000e+00 : f32
    %35 = vector.broadcast %cst_34 : f32 to vector<8x47xf32>
    %36 = arith.maximumf %34, %35 : vector<8x47xf32>
    %c0_35 = arith.constant 0 : index
    %c0_36 = arith.constant 0 : index
    %37 = vector.load %arg13[%c0_35, %c0_36] : memref<47x58xf32, #tpu.memory_space<vmem>>, vector<47x58xf32>
    %cst_37 = arith.constant dense<0.000000e+00> : vector<8x58xf32>
    %38 = tpu.matmul %36, %37, %cst_37 {dimension_numbers = #tpu.dot_dimension_numbers<[1], [0], [0], [1], [0, 0, 1, 1], [], []>} : vector<8x47xf32>, vector<47x58xf32>, vector<8x58xf32> -> vector<8x58xf32>
    %c0_38 = arith.constant 0 : index
    %c0_39 = arith.constant 0 : index
    %39 = vector.load %arg14[%c0_38, %c0_39] : memref<50x58xf32, #tpu.memory_space<vmem>>, vector<50x58xf32>
    %cst_40 = arith.constant dense<0.000000e+00> : vector<8x58xf32>
    %40 = tpu.matmul %20, %39, %cst_40 {dimension_numbers = #tpu.dot_dimension_numbers<[1], [0], [0], [1], [0, 0, 1, 1], [], []>} : vector<8x50xf32>, vector<50x58xf32>, vector<8x58xf32> -> vector<8x58xf32>
    %41 = arith.addf %38, %40 : vector<8x58xf32>
    %c0_41 = arith.constant 0 : index
    %c0_42 = arith.constant 0 : index
    %42 = vector.load %arg15[%c0_41, %c0_42] : memref<1x58xf32, #tpu.memory_space<vmem>>, vector<1x58xf32>
    %43 = vector.broadcast %42 : vector<1x58xf32> to vector<8x58xf32>
    %44 = arith.addf %41, %43 : vector<8x58xf32>
    %cst_43 = arith.constant 0.000000e+00 : f32
    %45 = vector.broadcast %cst_43 : f32 to vector<8x58xf32>
    %46 = arith.maximumf %44, %45 : vector<8x58xf32>
    %c0_44 = arith.constant 0 : index
    %c0_45 = arith.constant 0 : index
    %47 = vector.load %arg16[%c0_44, %c0_45] : memref<58x29xf32, #tpu.memory_space<vmem>>, vector<58x29xf32>
    %cst_46 = arith.constant dense<0.000000e+00> : vector<8x29xf32>
    %48 = tpu.matmul %46, %47, %cst_46 {dimension_numbers = #tpu.dot_dimension_numbers<[1], [0], [0], [1], [0, 0, 1, 1], [], []>} : vector<8x58xf32>, vector<58x29xf32>, vector<8x29xf32> -> vector<8x29xf32>
    %c0_47 = arith.constant 0 : index
    %c0_48 = arith.constant 0 : index
    %49 = vector.load %arg17[%c0_47, %c0_48] : memref<1x29xf32, #tpu.memory_space<vmem>>, vector<1x29xf32>
    %50 = vector.broadcast %49 : vector<1x29xf32> to vector<8x29xf32>
    %51 = arith.addf %48, %50 : vector<8x29xf32>
    %cst_49 = arith.constant 0.000000e+00 : f32
    %52 = vector.broadcast %cst_49 : f32 to vector<8x29xf32>
    %53 = arith.maximumf %51, %52 : vector<8x29xf32>
    %c0_50 = arith.constant 0 : index
    %c0_51 = arith.constant 0 : index
    %54 = vector.load %arg18[%c0_50, %c0_51] : memref<29x1xf32, #tpu.memory_space<vmem>>, vector<29x1xf32>
    %cst_52 = arith.constant dense<0.000000e+00> : vector<8x1xf32>
    %55 = tpu.matmul %53, %54, %cst_52 {dimension_numbers = #tpu.dot_dimension_numbers<[1], [0], [0], [1], [0, 0, 1, 1], [], []>} : vector<8x29xf32>, vector<29x1xf32>, vector<8x1xf32> -> vector<8x1xf32>
    %c0_53 = arith.constant 0 : index
    %c0_54 = arith.constant 0 : index
    %56 = vector.load %arg19[%c0_53, %c0_54] : memref<1x1xf32, #tpu.memory_space<vmem>>, vector<1x1xf32>
    %57 = vector.broadcast %56 : vector<1x1xf32> to vector<8x1xf32>
    %58 = arith.addf %55, %57 : vector<8x1xf32>
    %59 = arith.negf %58 : vector<8x1xf32>
    %60 = math.exp %59 : vector<8x1xf32>
    %cst_55 = arith.constant 1.000000e+00 : f32
    %61 = vector.broadcast %cst_55 : f32 to vector<8x1xf32>
    %62 = arith.addf %61, %60 : vector<8x1xf32>
    %63 = arith.divf %61, %62 : vector<8x1xf32>
    %c0_56 = arith.constant 0 : index
    %c0_57 = arith.constant 0 : index
    %64 = vector.load %arg20[%c0_56, %c0_57] : memref<8x1xf32, #tpu.memory_space<vmem>>, vector<8x1xf32>
    tpu.vector_store %arg20[%c0_56, %c0_57], %63 {strides = array<i32>} : memref<8x1xf32, #tpu.memory_space<vmem>>, vector<8x1xf32>,
    return
  }
  func.func @transform_0(%arg0: i32) -> (i32, i32) {
    %c0_i32 = arith.constant 0 : i32
    %c0_i32_0 = arith.constant 0 : i32
    return %arg0, %c0_i32 : i32, i32
  }
  func.func @transform_1(%arg0: i32) -> (i32, i32) {
    %c0_i32 = arith.constant 0 : i32
    %c0_i32_0 = arith.constant 0 : i32
    return %arg0, %c0_i32 : i32, i32
  }
  func.func @transform_2(%arg0: i32) -> (i32, i32) {
    %c0_i32 = arith.constant 0 : i32
    %c0_i32_0 = arith.constant 0 : i32
    return %arg0, %c0_i32 : i32, i32
  }
  func.func @transform_3(%arg0: i32) -> (i32, i32) {
    %c0_i32 = arith.constant 0 : i32
    %c0_i32_0 = arith.constant 0 : i32
    %c0_i32_1 = arith.constant 0 : i32
    return %c0_i32, %c0_i32_0 : i32, i32
  }
  func.func @transform_4(%arg0: i32) -> (i32, i32) {
    %c0_i32 = arith.constant 0 : i32
    %c0_i32_0 = arith.constant 0 : i32
    %c0_i32_1 = arith.constant 0 : i32
    return %c0_i32, %c0_i32_0 : i32, i32
  }
  func.func @transform_5(%arg0: i32) -> (i32, i32) {
    %c0_i32 = arith.constant 0 : i32
    %c0_i32_0 = arith.constant 0 : i32
    %c0_i32_1 = arith.constant 0 : i32
    return %c0_i32, %c0_i32_0 : i32, i32
  }
  func.func @transform_6(%arg0: i32) -> (i32, i32) {
    %c0_i32 = arith.constant 0 : i32
    %c0_i32_0 = arith.constant 0 : i32
    %c0_i32_1 = arith.constant 0 : i32
    return %c0_i32, %c0_i32_0 : i32, i32
  }
  func.func @transform_7(%arg0: i32) -> (i32, i32) {
    %c0_i32 = arith.constant 0 : i32
    %c0_i32_0 = arith.constant 0 : i32
    %c0_i32_1 = arith.constant 0 : i32
    return %c0_i32, %c0_i32_0 : i32, i32
  }
  func.func @transform_8(%arg0: i32) -> (i32, i32) {
    %c0_i32 = arith.constant 0 : i32
    %c0_i32_0 = arith.constant 0 : i32
    %c0_i32_1 = arith.constant 0 : i32
    return %c0_i32, %c0_i32_0 : i32, i32
  }
  func.func @transform_9(%arg0: i32) -> (i32, i32) {
    %c0_i32 = arith.constant 0 : i32
    %c0_i32_0 = arith.constant 0 : i32
    %c0_i32_1 = arith.constant 0 : i32
    return %c0_i32, %c0_i32_0 : i32, i32
  }
  func.func @transform_10(%arg0: i32) -> (i32, i32) {
    %c0_i32 = arith.constant 0 : i32
    %c0_i32_0 = arith.constant 0 : i32
    %c0_i32_1 = arith.constant 0 : i32
    return %c0_i32, %c0_i32_0 : i32, i32
  }
  func.func @transform_11(%arg0: i32) -> (i32, i32) {
    %c0_i32 = arith.constant 0 : i32
    %c0_i32_0 = arith.constant 0 : i32
    %c0_i32_1 = arith.constant 0 : i32
    return %c0_i32, %c0_i32_0 : i32, i32
  }
  func.func @transform_12(%arg0: i32) -> (i32, i32) {
    %c0_i32 = arith.constant 0 : i32
    %c0_i32_0 = arith.constant 0 : i32
    %c0_i32_1 = arith.constant 0 : i32
    return %c0_i32, %c0_i32_0 : i32, i32
  }
  func.func @transform_13(%arg0: i32) -> (i32, i32) {
    %c0_i32 = arith.constant 0 : i32
    %c0_i32_0 = arith.constant 0 : i32
    %c0_i32_1 = arith.constant 0 : i32
    return %c0_i32, %c0_i32_0 : i32, i32
  }
  func.func @transform_14(%arg0: i32) -> (i32, i32) {
    %c0_i32 = arith.constant 0 : i32
    %c0_i32_0 = arith.constant 0 : i32
    %c0_i32_1 = arith.constant 0 : i32
    return %c0_i32, %c0_i32_0 : i32, i32
  }
  func.func @transform_15(%arg0: i32) -> (i32, i32) {
    %c0_i32 = arith.constant 0 : i32
    %c0_i32_0 = arith.constant 0 : i32
    %c0_i32_1 = arith.constant 0 : i32
    return %c0_i32, %c0_i32_0 : i32, i32
  }
  func.func @transform_16(%arg0: i32) -> (i32, i32) {
    %c0_i32 = arith.constant 0 : i32
    %c0_i32_0 = arith.constant 0 : i32
    %c0_i32_1 = arith.constant 0 : i32
    return %c0_i32, %c0_i32_0 : i32, i32
  }
  func.func @transform_17(%arg0: i32) -> (i32, i32) {
    %c0_i32 = arith.constant 0 : i32
    %c0_i32_0 = arith.constant 0 : i32
    %c0_i32_1 = arith.constant 0 : i32
    return %c0_i32, %c0_i32_0 : i32, i32
  }
  func.func @transform_18(%arg0: i32) -> (i32, i32) {
    %c0_i32 = arith.constant 0 : i32
    %c0_i32_0 = arith.constant 0 : i32
    %c0_i32_1 = arith.constant 0 : i32
    return %c0_i32, %c0_i32_0 : i32, i32
  }
  func.func @transform_19(%arg0: i32) -> (i32, i32) {
    %c0_i32 = arith.constant 0 : i32
    %c0_i32_0 = arith.constant 0 : i32
    return %arg0, %c0_i32 : i32, i32
  }
}

</mosaic_0001>

<llo_original>
// kernel: tpu_custom_call.1
$region0: #{tpu_custom_call.1}
  #allocation0 [shape = 'u32[]', space=smem, size = 0x4, offset = 0x4, fixed_abs, tag = 'smem constant byte address 0x4 - core index']
  #allocation1 [shape = 'u32[144,128]{1,0:T(1,128)}', space=vmem, size = 0x12000, scoped, tag = 'internal scratch']
  #allocation2 [shape = 'f32[1,1]{1,0:T(1,128)S(1)}', space=vmem, size = 0x200, scoped, tag = 'scoped memory for tpu_custom_call.1']
  %s0 = inlined_call_operand.vmem [shape: f32[8,20], index: 0, kind: input, shape index: {}]
  %s1 = inlined_call_operand.vmem [shape: f32[8,113], index: 1, kind: input, shape index: {}]
  %s2 = inlined_call_operand.vmem [shape: f32[8,113], index: 2, kind: input, shape index: {}]
  %s3 = inlined_call_operand.vmem [shape: f32[113,67], index: 3, kind: input, shape index: {}]
  %s4 = inlined_call_operand.vmem [shape: f32[1,67], index: 4, kind: input, shape index: {}]
  %s5 = inlined_call_operand.vmem [shape: f32[67,50], index: 5, kind: input, shape index: {}]
  %s6 = inlined_call_operand.vmem [shape: f32[1,50], index: 6, kind: input, shape index: {}]
  %s7 = inlined_call_operand.vmem [shape: f32[20,12], index: 7, kind: input, shape index: {}]
  %s8 = inlined_call_operand.vmem [shape: f32[1,12], index: 8, kind: input, shape index: {}]
  %s9 = inlined_call_operand.vmem [shape: f32[12,47], index: 9, kind: input, shape index: {}]
  %s10 = inlined_call_operand.vmem [shape: f32[67,47], index: 10, kind: input, shape index: {}]
  %s11 = inlined_call_operand.vmem [shape: f32[1,47], index: 11, kind: input, shape index: {}]
  %s12 = inlined_call_operand.vmem [shape: f32[47,58], index: 12, kind: input, shape index: {}]
  %s13 = inlined_call_operand.vmem [shape: f32[50,58], index: 13, kind: input, shape index: {}]
  %s14 = inlined_call_operand.vmem [shape: f32[1,58], index: 14, kind: input, shape index: {}]
  %s15 = inlined_call_operand.vmem [shape: f32[58,29], index: 15, kind: input, shape index: {}]
  %s16 = inlined_call_operand.vmem [shape: f32[1,29], index: 16, kind: input, shape index: {}]
  %s17 = inlined_call_operand.vmem [shape: f32[29,1], index: 17, kind: input, shape index: {}]
  %s18 = inlined_call_operand.<no memory space> [shape: f32[1,1], index: 18, kind: input, shape index: {}]
  %s19 = inlined_call_operand.vmem [shape: f32[8,1], index: 19, kind: output, shape index: {}]
  %s20 = sld [smem:[#allocation0]]
  $region86: #{tpu_custom_call.1} parent=0
    _
  %s22 = ssub.s32 1, %s20
  %s23 = scalar_select 0, %s22, %s20
  %v24 = vstv %s18
  %25 = vst [vmem:[#allocation2] sm:$0x1] %v24
  // Predicated region
  $region2: #{tpu_custom_call.1} parent=0 // pred_check
    _
  $region3: #{tpu_custom_call.1} parent=0 // pred_check_branch
    %27 = sbr.rel (0) target = $region5
  $region4: #{tpu_custom_call.1} parent=0 // pred_region
    _
  $region5: #{tpu_custom_call.1} parent=0 // pred_fallthru
    _
  // Predicated region
  $region6: #{tpu_custom_call.1} parent=0 // pred_check
    _
  $region7: #{tpu_custom_call.1} parent=0 // pred_check_branch
    %29 = sbr.rel (0) target = $region9
  $region8: #{tpu_custom_call.1} parent=0 // pred_region
    _
  $region9: #{tpu_custom_call.1} parent=0 // pred_fallthru
    _
  // Predicated region
  $region10: #{tpu_custom_call.1} parent=0 // pred_check
    _
  $region11: #{tpu_custom_call.1} parent=0 // pred_check_branch
    %31 = sbr.rel (0) target = $region13
  $region12: #{tpu_custom_call.1} parent=0 // pred_region
    _
  $region13: #{tpu_custom_call.1} parent=0 // pred_fallthru
    _
  // Predicated region
  $region14: #{tpu_custom_call.1} parent=0 // pred_check
    _
  $region15: #{tpu_custom_call.1} parent=0 // pred_check_branch
    %33 = sbr.rel (0) target = $region17
  $region16: #{tpu_custom_call.1} parent=0 // pred_region
    _
  $region17: #{tpu_custom_call.1} parent=0 // pred_fallthru
    _
  // Predicated region
  $region18: #{tpu_custom_call.1} parent=0 // pred_check
    _
  $region19: #{tpu_custom_call.1} parent=0 // pred_check_branch
    %35 = sbr.rel (0) target = $region21
  $region20: #{tpu_custom_call.1} parent=0 // pred_region
    _
  $region21: #{tpu_custom_call.1} parent=0 // pred_fallthru
    _
  // Predicated region
  $region22: #{tpu_custom_call.1} parent=0 // pred_check
    _
  $region23: #{tpu_custom_call.1} parent=0 // pred_check_branch
    %37 = sbr.rel (0) target = $region25
  $region24: #{tpu_custom_call.1} parent=0 // pred_region
    _
  $region25: #{tpu_custom_call.1} parent=0 // pred_fallthru
    _
  // Predicated region
  $region26: #{tpu_custom_call.1} parent=0 // pred_check
    _
  $region27: #{tpu_custom_call.1} parent=0 // pred_check_branch
    %39 = sbr.rel (0) target = $region29
  $region28: #{tpu_custom_call.1} parent=0 // pred_region
    _
  $region29: #{tpu_custom_call.1} parent=0 // pred_fallthru
    _
  // Predicated region
  $region30: #{tpu_custom_call.1} parent=0 // pred_check
    _
  $region31: #{tpu_custom_call.1} parent=0 // pred_check_branch
    %41 = sbr.rel (0) target = $region33
  $region32: #{tpu_custom_call.1} parent=0 // pred_region
    _
  $region33: #{tpu_custom_call.1} parent=0 // pred_fallthru
    _
  // Predicated region
  $region34: #{tpu_custom_call.1} parent=0 // pred_check
    _
  $region35: #{tpu_custom_call.1} parent=0 // pred_check_branch
    %43 = sbr.rel (0) target = $region37
  $region36: #{tpu_custom_call.1} parent=0 // pred_region
    _
  $region37: #{tpu_custom_call.1} parent=0 // pred_fallthru
    _
  // Predicated region
  $region38: #{tpu_custom_call.1} parent=0 // pred_check
    _
  $region39: #{tpu_custom_call.1} parent=0 // pred_check_branch
    %45 = sbr.rel (0) target = $region41
  $region40: #{tpu_custom_call.1} parent=0 // pred_region
    _
  $region41: #{tpu_custom_call.1} parent=0 // pred_fallthru
    _
  // Predicated region
  $region42: #{tpu_custom_call.1} parent=0 // pred_check
    _
  $region43: #{tpu_custom_call.1} parent=0 // pred_check_branch
    %47 = sbr.rel (0) target = $region45
  $region44: #{tpu_custom_call.1} parent=0 // pred_region
    _
  $region45: #{tpu_custom_call.1} parent=0 // pred_fallthru
    _
  // Predicated region
  $region46: #{tpu_custom_call.1} parent=0 // pred_check
    _
  $region47: #{tpu_custom_call.1} parent=0 // pred_check_branch
    %49 = sbr.rel (0) target = $region49
  $region48: #{tpu_custom_call.1} parent=0 // pred_region
    _
  $region49: #{tpu_custom_call.1} parent=0 // pred_fallthru
    _
  // Predicated region
  $region50: #{tpu_custom_call.1} parent=0 // pred_check
    _
  $region51: #{tpu_custom_call.1} parent=0 // pred_check_branch
    %51 = sbr.rel (0) target = $region53
  $region52: #{tpu_custom_call.1} parent=0 // pred_region
    _
  $region53: #{tpu_custom_call.1} parent=0 // pred_fallthru
    _
  // Predicated region
  $region54: #{tpu_custom_call.1} parent=0 // pred_check
    _
  $region55: #{tpu_custom_call.1} parent=0 // pred_check_branch
    %53 = sbr.rel (0) target = $region57
  $region56: #{tpu_custom_call.1} parent=0 // pred_region
    _
  $region57: #{tpu_custom_call.1} parent=0 // pred_fallthru
    _
  // Predicated region
  $region58: #{tpu_custom_call.1} parent=0 // pred_check
    _
  $region59: #{tpu_custom_call.1} parent=0 // pred_check_branch
    %55 = sbr.rel (0) target = $region61
  $region60: #{tpu_custom_call.1} parent=0 // pred_region
    _
  $region61: #{tpu_custom_call.1} parent=0 // pred_fallthru
    _
  // Predicated region
  $region62: #{tpu_custom_call.1} parent=0 // pred_check
    _
  $region63: #{tpu_custom_call.1} parent=0 // pred_check_branch
    %57 = sbr.rel (0) target = $region65
  $region64: #{tpu_custom_call.1} parent=0 // pred_region
    _
  $region65: #{tpu_custom_call.1} parent=0 // pred_fallthru
    _
  // Predicated region
  $region66: #{tpu_custom_call.1} parent=0 // pred_check
    _
  $region67: #{tpu_custom_call.1} parent=0 // pred_check_branch
    %59 = sbr.rel (0) target = $region69
  $region68: #{tpu_custom_call.1} parent=0 // pred_region
    _
  $region69: #{tpu_custom_call.1} parent=0 // pred_fallthru
    _
  // Predicated region
  $region70: #{tpu_custom_call.1} parent=0 // pred_check
    _
  $region71: #{tpu_custom_call.1} parent=0 // pred_check_branch
    %61 = sbr.rel (0) target = $region73
  $region72: #{tpu_custom_call.1} parent=0 // pred_region
    _
  $region73: #{tpu_custom_call.1} parent=0 // pred_fallthru
    _
  // Predicated region
  $region74: #{tpu_custom_call.1} parent=0 // pred_check
    _
  $region75: #{tpu_custom_call.1} parent=0 // pred_check_branch
    %63 = sbr.rel (0) target = $region77
  $region76: #{tpu_custom_call.1} parent=0 // pred_region
    _
  $region77: #{tpu_custom_call.1} parent=0 // pred_fallthru
    _
  %v64 = vld [vmem:[%s2] sm:$0xff]
  %v65 = vld [vmem:[%s3] sm:$0xff]
  %v66 = vld [vmem:[%s3 + $0x8] sm:$0xff]
  %v67 = vld [vmem:[%s3 + $0x10] sm:$0xff]
  %v68 = vld [vmem:[%s3 + $0x18] sm:$0xff]
  %v69 = vld [vmem:[%s3 + $0x20] sm:$0xff]
  %v70 = vld [vmem:[%s3 + $0x28] sm:$0xff]
  %v71 = vld [vmem:[%s3 + $0x30] sm:$0xff]
  %v72 = vld [vmem:[%s3 + $0x38] sm:$0xff]
  %v73 = vld [vmem:[%s3 + $0x40] sm:$0xff]
  %v74 = vld [vmem:[%s3 + $0x48] sm:$0xff]
  %v75 = vld [vmem:[%s3 + $0x50] sm:$0xff]
  %v76 = vld [vmem:[%s3 + $0x58] sm:$0xff]
  %v77 = vld [vmem:[%s3 + $0x60] sm:$0xff]
  %v78 = vld [vmem:[%s3 + $0x68] sm:$0xff]
  %v79 = vld [vmem:[%s3 + $0x70] sm:$0x1]
  %v80 = vld [vmem:[%s4] sm:$0x1]
  %v82 = vlaneseq
  %v83 = vshrl.u32 %v82, 7
  %v84 = vsub.s32 0, %v83
  %v85 = vrot.slane %v80, %v84
  %vm87 = vcmask 924672
  %v89 = vsel %vm87, %v64, 0
  %vm91 = vcmask 1040384
  %v93 = vsel %vm91, %v79, 0
  %95 = vmatprep.subr.mxu0 0.0
  %96 = vmatpush1.msra.mxu0 0.0
  %97 = vmatprep.subr.mxu0 0.0
  %98 = vmatpush1.msra.mxu0 %v93
  %99 = vmatprep.subr.mxu0 0.0
  %100 = vmatpush1.msra.mxu0 %v78
  %101 = vmatprep.subr.mxu0 0.0
  %102 = vmatpush1.msra.mxu0 %v77
  %103 = vmatprep.subr.mxu0 0.0
  %104 = vmatpush1.msra.mxu0 %v76
  %105 = vmatprep.subr.mxu0 0.0
  %106 = vmatpush1.msra.mxu0 %v75
  %107 = vmatprep.subr.mxu0 0.0
  %108 = vmatpush1.msra.mxu0 %v74
  %109 = vmatprep.subr.mxu0 0.0
  %110 = vmatpush1.msra.mxu0 %v73
  %111 = vmatprep.subr.mxu0 0.0
  %112 = vmatpush1.msra.mxu0 %v72
  %113 = vmatprep.subr.mxu0 0.0
  %114 = vmatpush1.msra.mxu0 %v71
  %115 = vmatprep.subr.mxu0 0.0
  %116 = vmatpush1.msra.mxu0 %v70
  %117 = vmatprep.subr.mxu0 0.0
  %118 = vmatpush1.msra.mxu0 %v69
  %119 = vmatprep.subr.mxu0 0.0
  %120 = vmatpush1.msra.mxu0 %v68
  %121 = vmatprep.subr.mxu0 0.0
  %122 = vmatpush1.msra.mxu0 %v67
  %123 = vmatprep.subr.mxu0 0.0
  %124 = vmatpush1.msra.mxu0 %v66
  %125 = vmatprep.subr.mxu0 0.0
  %126 = vmatpush1.msra.mxu0 %v65
  %127 = vmatprep.subr.mxu0 0.0
  %128 = vmatpush2.msra.mxu0 0.0
  %129 = vmatprep.subr.mxu0 0.0
  %130 = vmatpush2.msra.mxu0 0.0
  %131 = vmatprep.subr.mxu0 0.0
  %132 = vmatpush2.msra.mxu0 0.0
  %133 = vmatprep.subr.mxu0 0.0
  %134 = vmatpush2.msra.mxu0 0.0
  %135 = vmatprep.subr.mxu0 0.0
  %136 = vmatpush2.msra.mxu0 0.0
  %137 = vmatprep.subr.mxu0 0.0
  %138 = vmatpush2.msra.mxu0 0.0
  %139 = vmatprep.subr.mxu0 0.0
  %140 = vmatpush2.msra.mxu0 0.0
  %141 = vmatprep.subr.mxu0 0.0
  %142 = vmatpush2.msra.mxu0 0.0
  %143 = vmatprep.subr.mxu0 0.0
  %144 = vmatpush2.msra.mxu0 0.0
  %145 = vmatprep.subr.mxu0 0.0
  %146 = vmatpush2.msra.mxu0 0.0
  %147 = vmatprep.subr.mxu0 0.0
  %148 = vmatpush2.msra.mxu0 0.0
  %149 = vmatprep.subr.mxu0 0.0
  %150 = vmatpush2.msra.mxu0 0.0
  %151 = vmatprep.subr.mxu0 0.0
  %152 = vmatpush2.msra.mxu0 0.0
  %153 = vmatprep.subr.mxu0 0.0
  %154 = vmatpush2.msra.mxu0 0.0
  %155 = vmatprep.subr.mxu0 0.0
  %156 = vmatpush2.msra.mxu0 0.0
  %157 = vmatprep.subr.mxu0 0.0
  %158 = vmatpush2.msra.mxu0 0.0
  %159 = vmatprep.mubr.f32.mxu0 0.0
  %160 = vmatmul.mubr.f32.gmra.mxu0 %v89
  %v161 = vpop.f32.mrf.mxu0
  %v162 = vadd.f32 %v85, %v161
  %v163 = vpop.f32.mrf.mxu0
  %164 = vdwg.mxu0
  %v165 = vld [vmem:[%s1] sm:$0xff]
  %v167 = vsel %vm87, %v165, 0
  %169 = vmatprep.subr.mxu0 0.0
  %170 = vmatpush1.msra.mxu0 0.0
  %171 = vmatprep.subr.mxu0 0.0
  %172 = vmatpush1.msra.mxu0 %v93
  %173 = vmatprep.subr.mxu0 0.0
  %174 = vmatpush1.msra.mxu0 %v78
  %175 = vmatprep.subr.mxu0 0.0
  %176 = vmatpush1.msra.mxu0 %v77
  %177 = vmatprep.subr.mxu0 0.0
  %178 = vmatpush1.msra.mxu0 %v76
  %179 = vmatprep.subr.mxu0 0.0
  %180 = vmatpush1.msra.mxu0 %v75
  %181 = vmatprep.subr.mxu0 0.0
  %182 = vmatpush1.msra.mxu0 %v74
  %183 = vmatprep.subr.mxu0 0.0
  %184 = vmatpush1.msra.mxu0 %v73
  %185 = vmatprep.subr.mxu0 0.0
  %186 = vmatpush1.msra.mxu0 %v72
  %187 = vmatprep.subr.mxu0 0.0
  %188 = vmatpush1.msra.mxu0 %v71
  %189 = vmatprep.subr.mxu0 0.0
  %190 = vmatpush1.msra.mxu0 %v70
  %191 = vmatprep.subr.mxu0 0.0
  %192 = vmatpush1.msra.mxu0 %v69
  %193 = vmatprep.subr.mxu0 0.0
  %194 = vmatpush1.msra.mxu0 %v68
  %195 = vmatprep.subr.mxu0 0.0
  %196 = vmatpush1.msra.mxu0 %v67
  %197 = vmatprep.subr.mxu0 0.0
  %198 = vmatpush1.msra.mxu0 %v66
  %199 = vmatprep.subr.mxu0 0.0
  %200 = vmatpush1.msra.mxu0 %v65
  %201 = vmatprep.subr.mxu0 0.0
  %202 = vmatpush2.msra.mxu0 0.0
  %203 = vmatprep.subr.mxu0 0.0
  %204 = vmatpush2.msra.mxu0 0.0
  %205 = vmatprep.subr.mxu0 0.0
  %206 = vmatpush2.msra.mxu0 0.0
  %207 = vmatprep.subr.mxu0 0.0
  %208 = vmatpush2.msra.mxu0 0.0
  %209 = vmatprep.subr.mxu0 0.0
  %210 = vmatpush2.msra.mxu0 0.0
  %211 = vmatprep.subr.mxu0 0.0
  %212 = vmatpush2.msra.mxu0 0.0
  %213 = vmatprep.subr.mxu0 0.0
  %214 = vmatpush2.msra.mxu0 0.0
  %215 = vmatprep.subr.mxu0 0.0
  %216 = vmatpush2.msra.mxu0 0.0
  %217 = vmatprep.subr.mxu0 0.0
  %218 = vmatpush2.msra.mxu0 0.0
  %219 = vmatprep.subr.mxu0 0.0
  %220 = vmatpush2.msra.mxu0 0.0
  %221 = vmatprep.subr.mxu0 0.0
  %222 = vmatpush2.msra.mxu0 0.0
  %223 = vmatprep.subr.mxu0 0.0
  %224 = vmatpush2.msra.mxu0 0.0
  %225 = vmatprep.subr.mxu0 0.0
  %226 = vmatpush2.msra.mxu0 0.0
  %227 = vmatprep.subr.mxu0 0.0
  %228 = vmatpush2.msra.mxu0 0.0
  %229 = vmatprep.subr.mxu0 0.0
  %230 = vmatpush2.msra.mxu0 0.0
  %231 = vmatprep.subr.mxu0 0.0
  %232 = vmatpush2.msra.mxu0 0.0
  %233 = vmatprep.mubr.f32.mxu0 0.0
  %234 = vmatmul.mubr.f32.gmra.mxu0 %v167
  %v235 = vpop.f32.mrf.mxu0
  %v236 = vadd.f32 %v85, %v235
  %v237 = vpop.f32.mrf.mxu0
  %238 = vdwg.mxu0
  %v239 = vmax.f32 %v236, 0.0
  %v240 = vld [vmem:[%s5] sm:$0xff]
  %v241 = vld [vmem:[%s5 + $0x8] sm:$0xff]
  %v242 = vld [vmem:[%s5 + $0x10] sm:$0xff]
  %v243 = vld [vmem:[%s5 + $0x18] sm:$0xff]
  %v244 = vld [vmem:[%s5 + $0x20] sm:$0xff]
  %v245 = vld [vmem:[%s5 + $0x28] sm:$0xff]
  %v246 = vld [vmem:[%s5 + $0x30] sm:$0xff]
  %v247 = vld [vmem:[%s5 + $0x38] sm:$0xff]
  %v248 = vld [vmem:[%s5 + $0x40] sm:$0x7]
  %v249 = vld [vmem:[%s6] sm:$0x1]
  %v251 = vlaneseq
  %v252 = vshrl.u32 %v251, 7
  %v253 = vsub.s32 0, %v252
  %v254 = vrot.slane %v249, %v253
  %vm256 = vcmask 547840
  %v258 = vsel %vm256, %v239, 0
  %vm260 = vcmask 1042432
  %v262 = vsel %vm260, %v248, 0
  %264 = vmatprep.subr.mxu0 0.0
  %265 = vmatpush1.msra.mxu0 0.0
  %266 = vmatprep.subr.mxu0 0.0
  %267 = vmatpush1.msra.mxu0 0.0
  %268 = vmatprep.subr.mxu0 0.0
  %269 = vmatpush1.msra.mxu0 0.0
  %270 = vmatprep.subr.mxu0 0.0
  %271 = vmatpush1.msra.mxu0 0.0
  %272 = vmatprep.subr.mxu0 0.0
  %273 = vmatpush1.msra.mxu0 0.0
  %274 = vmatprep.subr.mxu0 0.0
  %275 = vmatpush1.msra.mxu0 0.0
  %276 = vmatprep.subr.mxu0 0.0
  %277 = vmatpush1.msra.mxu0 0.0
  %278 = vmatprep.subr.mxu0 0.0
  %279 = vmatpush1.msra.mxu0 %v262
  %280 = vmatprep.subr.mxu0 0.0
  %281 = vmatpush1.msra.mxu0 %v247
  %282 = vmatprep.subr.mxu0 0.0
  %283 = vmatpush1.msra.mxu0 %v246
  %284 = vmatprep.subr.mxu0 0.0
  %285 = vmatpush1.msra.mxu0 %v245
  %286 = vmatprep.subr.mxu0 0.0
  %287 = vmatpush1.msra.mxu0 %v244
  %288 = vmatprep.subr.mxu0 0.0
  %289 = vmatpush1.msra.mxu0 %v243
  %290 = vmatprep.subr.mxu0 0.0
  %291 = vmatpush1.msra.mxu0 %v242
  %292 = vmatprep.subr.mxu0 0.0
  %293 = vmatpush1.msra.mxu0 %v241
  %294 = vmatprep.subr.mxu0 0.0
  %295 = vmatpush1.msra.mxu0 %v240
  %296 = vmatprep.subr.mxu0 0.0
  %297 = vmatpush2.msra.mxu0 0.0
  %298 = vmatprep.subr.mxu0 0.0
  %299 = vmatpush2.msra.mxu0 0.0
  %300 = vmatprep.subr.mxu0 0.0
  %301 = vmatpush2.msra.mxu0 0.0
  %302 = vmatprep.subr.mxu0 0.0
  %303 = vmatpush2.msra.mxu0 0.0
  %304 = vmatprep.subr.mxu0 0.0
  %305 = vmatpush2.msra.mxu0 0.0
  %306 = vmatprep.subr.mxu0 0.0
  %307 = vmatpush2.msra.mxu0 0.0
  %308 = vmatprep.subr.mxu0 0.0
  %309 = vmatpush2.msra.mxu0 0.0
  %310 = vmatprep.subr.mxu0 0.0
  %311 = vmatpush2.msra.mxu0 0.0
  %312 = vmatprep.subr.mxu0 0.0
  %313 = vmatpush2.msra.mxu0 0.0
  %314 = vmatprep.subr.mxu0 0.0
  %315 = vmatpush2.msra.mxu0 0.0
  %316 = vmatprep.subr.mxu0 0.0
  %317 = vmatpush2.msra.mxu0 0.0
  %318 = vmatprep.subr.mxu0 0.0
  %319 = vmatpush2.msra.mxu0 0.0
  %320 = vmatprep.subr.mxu0 0.0
  %321 = vmatpush2.msra.mxu0 0.0
  %322 = vmatprep.subr.mxu0 0.0
  %323 = vmatpush2.msra.mxu0 0.0
  %324 = vmatprep.subr.mxu0 0.0
  %325 = vmatpush2.msra.mxu0 0.0
  %326 = vmatprep.subr.mxu0 0.0
  %327 = vmatpush2.msra.mxu0 0.0
  %328 = vmatprep.mubr.f32.mxu0 0.0
  %329 = vmatmul.mubr.f32.gmra.mxu0 %v258
  %v330 = vpop.f32.mrf.mxu0
  %v331 = vadd.f32 %v254, %v330
  %v332 = vpop.f32.mrf.mxu0
  %333 = vdwg.mxu0
  %v334 = vmax.f32 %v331, 0.0
  %v335 = vld [vmem:[%s0] sm:$0xff]
  %v336 = vld [vmem:[%s7] sm:$0xff]
  %v337 = vld [vmem:[%s7 + $0x8] sm:$0xff]
  %v338 = vld [vmem:[%s7 + $0x10] sm:$0xf]
  %v339 = vld [vmem:[%s8] sm:$0x1]
  %v341 = vlaneseq
  %v342 = vshrl.u32 %v341, 7
  %v343 = vsub.s32 0, %v342
  %v344 = vrot.slane %v339, %v343
  %vm346 = vcmask 162816
  %v348 = vsel %vm346, %v335, 0
  %vm350 = vcmask 1043456
  %v352 = vsel %vm350, %v338, 0
  %354 = vmatprep.subr.mxu0 0.0
  %355 = vmatpush1.msra.mxu0 0.0
  %356 = vmatprep.subr.mxu0 0.0
  %357 = vmatpush1.msra.mxu0 0.0
  %358 = vmatprep.subr.mxu0 0.0
  %359 = vmatpush1.msra.mxu0 0.0
  %360 = vmatprep.subr.mxu0 0.0
  %361 = vmatpush1.msra.mxu0 0.0
  %362 = vmatprep.subr.mxu0 0.0
  %363 = vmatpush1.msra.mxu0 0.0
  %364 = vmatprep.subr.mxu0 0.0
  %365 = vmatpush1.msra.mxu0 0.0
  %366 = vmatprep.subr.mxu0 0.0
  %367 = vmatpush1.msra.mxu0 0.0
  %368 = vmatprep.subr.mxu0 0.0
  %369 = vmatpush1.msra.mxu0 0.0
  %370 = vmatprep.subr.mxu0 0.0
  %371 = vmatpush1.msra.mxu0 0.0
  %372 = vmatprep.subr.mxu0 0.0
  %373 = vmatpush1.msra.mxu0 0.0
  %374 = vmatprep.subr.mxu0 0.0
  %375 = vmatpush1.msra.mxu0 0.0
  %376 = vmatprep.subr.mxu0 0.0
  %377 = vmatpush1.msra.mxu0 0.0
  %378 = vmatprep.subr.mxu0 0.0
  %379 = vmatpush1.msra.mxu0 0.0
  %380 = vmatprep.subr.mxu0 0.0
  %381 = vmatpush1.msra.mxu0 %v352
  %382 = vmatprep.subr.mxu0 0.0
  %383 = vmatpush1.msra.mxu0 %v337
  %384 = vmatprep.subr.mxu0 0.0
  %385 = vmatpush1.msra.mxu0 %v336
  %386 = vmatprep.subr.mxu0 0.0
  %387 = vmatpush2.msra.mxu0 0.0
  %388 = vmatprep.subr.mxu0 0.0
  %389 = vmatpush2.msra.mxu0 0.0
  %390 = vmatprep.subr.mxu0 0.0
  %391 = vmatpush2.msra.mxu0 0.0
  %392 = vmatprep.subr.mxu0 0.0
  %393 = vmatpush2.msra.mxu0 0.0
  %394 = vmatprep.subr.mxu0 0.0
  %395 = vmatpush2.msra.mxu0 0.0
  %396 = vmatprep.subr.mxu0 0.0
  %397 = vmatpush2.msra.mxu0 0.0
  %398 = vmatprep.subr.mxu0 0.0
  %399 = vmatpush2.msra.mxu0 0.0
  %400 = vmatprep.subr.mxu0 0.0
  %401 = vmatpush2.msra.mxu0 0.0
  %402 = vmatprep.subr.mxu0 0.0
  %403 = vmatpush2.msra.mxu0 0.0
  %404 = vmatprep.subr.mxu0 0.0
  %405 = vmatpush2.msra.mxu0 0.0
  %406 = vmatprep.subr.mxu0 0.0
  %407 = vmatpush2.msra.mxu0 0.0
  %408 = vmatprep.subr.mxu0 0.0
  %409 = vmatpush2.msra.mxu0 0.0
  %410 = vmatprep.subr.mxu0 0.0
  %411 = vmatpush2.msra.mxu0 0.0
  %412 = vmatprep.subr.mxu0 0.0
  %413 = vmatpush2.msra.mxu0 0.0
  %414 = vmatprep.subr.mxu0 0.0
  %415 = vmatpush2.msra.mxu0 0.0
  %416 = vmatprep.subr.mxu0 0.0
  %417 = vmatpush2.msra.mxu0 0.0
  %418 = vmatprep.mubr.f32.mxu0 0.0
  %419 = vmatmul.mubr.f32.gmra.mxu0 %v348
  %v420 = vpop.f32.mrf.mxu0
  %v421 = vadd.f32 %v344, %v420
  %v422 = vpop.f32.mrf.mxu0
  %423 = vdwg.mxu0
  %v424 = vld [vmem:[%s9] sm:$0xff]
  %v425 = vld [vmem:[%s9 + $0x8] sm:$0xf]
  %v426 = vld [vmem:[%s10] sm:$0xff]
  %v427 = vld [vmem:[%s10 + $0x8] sm:$0xff]
  %v428 = vld [vmem:[%s10 + $0x10] sm:$0xff]
  %v429 = vld [vmem:[%s10 + $0x18] sm:$0xff]
  %v430 = vld [vmem:[%s10 + $0x20] sm:$0xff]
  %v431 = vld [vmem:[%s10 + $0x28] sm:$0xff]
  %v432 = vld [vmem:[%s10 + $0x30] sm:$0xff]
  %v433 = vld [vmem:[%s10 + $0x38] sm:$0xff]
  %v434 = vld [vmem:[%s10 + $0x40] sm:$0x7]
  %v436 = vsel %vm256, %v162, 0
  %v439 = vsel %vm260, %v434, 0
  %441 = vmatprep.subr.mxu0 0.0
  %442 = vmatpush1.msra.mxu0 0.0
  %443 = vmatprep.subr.mxu0 0.0
  %444 = vmatpush1.msra.mxu0 0.0
  %445 = vmatprep.subr.mxu0 0.0
  %446 = vmatpush1.msra.mxu0 0.0
  %447 = vmatprep.subr.mxu0 0.0
  %448 = vmatpush1.msra.mxu0 0.0
  %449 = vmatprep.subr.mxu0 0.0
  %450 = vmatpush1.msra.mxu0 0.0
  %451 = vmatprep.subr.mxu0 0.0
  %452 = vmatpush1.msra.mxu0 0.0
  %453 = vmatprep.subr.mxu0 0.0
  %454 = vmatpush1.msra.mxu0 0.0
  %455 = vmatprep.subr.mxu0 0.0
  %456 = vmatpush1.msra.mxu0 %v439
  %457 = vmatprep.subr.mxu0 0.0
  %458 = vmatpush1.msra.mxu0 %v433
  %459 = vmatprep.subr.mxu0 0.0
  %460 = vmatpush1.msra.mxu0 %v432
  %461 = vmatprep.subr.mxu0 0.0
  %462 = vmatpush1.msra.mxu0 %v431
  %463 = vmatprep.subr.mxu0 0.0
  %464 = vmatpush1.msra.mxu0 %v430
  %465 = vmatprep.subr.mxu0 0.0
  %466 = vmatpush1.msra.mxu0 %v429
  %467 = vmatprep.subr.mxu0 0.0
  %468 = vmatpush1.msra.mxu0 %v428
  %469 = vmatprep.subr.mxu0 0.0
  %470 = vmatpush1.msra.mxu0 %v427
  %471 = vmatprep.subr.mxu0 0.0
  %472 = vmatpush1.msra.mxu0 %v426
  %473 = vmatprep.subr.mxu0 0.0
  %474 = vmatpush2.msra.mxu0 0.0
  %475 = vmatprep.subr.mxu0 0.0
  %476 = vmatpush2.msra.mxu0 0.0
  %477 = vmatprep.subr.mxu0 0.0
  %478 = vmatpush2.msra.mxu0 0.0
  %479 = vmatprep.subr.mxu0 0.0
  %480 = vmatpush2.msra.mxu0 0.0
  %481 = vmatprep.subr.mxu0 0.0
  %482 = vmatpush2.msra.mxu0 0.0
  %483 = vmatprep.subr.mxu0 0.0
  %484 = vmatpush2.msra.mxu0 0.0
  %485 = vmatprep.subr.mxu0 0.0
  %486 = vmatpush2.msra.mxu0 0.0
  %487 = vmatprep.subr.mxu0 0.0
  %488 = vmatpush2.msra.mxu0 0.0
  %489 = vmatprep.subr.mxu0 0.0
  %490 = vmatpush2.msra.mxu0 0.0
  %491 = vmatprep.subr.mxu0 0.0
  %492 = vmatpush2.msra.mxu0 0.0
  %493 = vmatprep.subr.mxu0 0.0
  %494 = vmatpush2.msra.mxu0 0.0
  %495 = vmatprep.subr.mxu0 0.0
  %496 = vmatpush2.msra.mxu0 0.0
  %497 = vmatprep.subr.mxu0 0.0
  %498 = vmatpush2.msra.mxu0 0.0
  %499 = vmatprep.subr.mxu0 0.0
  %500 = vmatpush2.msra.mxu0 0.0
  %501 = vmatprep.subr.mxu0 0.0
  %502 = vmatpush2.msra.mxu0 0.0
  %503 = vmatprep.subr.mxu0 0.0
  %504 = vmatpush2.msra.mxu0 0.0
  %505 = vmatprep.mubr.f32.mxu0 0.0
  %506 = vmatmul.mubr.f32.gmra.mxu0 %v436
  %v507 = vpop.f32.mrf.mxu0
  %v508 = vadd.f32 0.0, %v507
  %v509 = vpop.f32.mrf.mxu0
  %510 = vdwg.mxu0
  %vm511 = vcmask 97280
  %v513 = vsel %vm511, %v421, 0
  %v516 = vsel %vm350, %v425, 0
  %518 = vmatprep.subr.mxu0 0.0
  %519 = vmatpush1.msra.mxu0 0.0
  %520 = vmatprep.subr.mxu0 0.0
  %521 = vmatpush1.msra.mxu0 0.0
  %522 = vmatprep.subr.mxu0 0.0
  %523 = vmatpush1.msra.mxu0 0.0
  %524 = vmatprep.subr.mxu0 0.0
  %525 = vmatpush1.msra.mxu0 0.0
  %526 = vmatprep.subr.mxu0 0.0
  %527 = vmatpush1.msra.mxu0 0.0
  %528 = vmatprep.subr.mxu0 0.0
  %529 = vmatpush1.msra.mxu0 0.0
  %530 = vmatprep.subr.mxu0 0.0
  %531 = vmatpush1.msra.mxu0 0.0
  %532 = vmatprep.subr.mxu0 0.0
  %533 = vmatpush1.msra.mxu0 0.0
  %534 = vmatprep.subr.mxu0 0.0
  %535 = vmatpush1.msra.mxu0 0.0
  %536 = vmatprep.subr.mxu0 0.0
  %537 = vmatpush1.msra.mxu0 0.0
  %538 = vmatprep.subr.mxu0 0.0
  %539 = vmatpush1.msra.mxu0 0.0
  %540 = vmatprep.subr.mxu0 0.0
  %541 = vmatpush1.msra.mxu0 0.0
  %542 = vmatprep.subr.mxu0 0.0
  %543 = vmatpush1.msra.mxu0 0.0
  %544 = vmatprep.subr.mxu0 0.0
  %545 = vmatpush1.msra.mxu0 0.0
  %546 = vmatprep.subr.mxu0 0.0
  %547 = vmatpush1.msra.mxu0 %v516
  %548 = vmatprep.subr.mxu0 0.0
  %549 = vmatpush1.msra.mxu0 %v424
  %550 = vmatprep.subr.mxu0 0.0
  %551 = vmatpush2.msra.mxu0 0.0
  %552 = vmatprep.subr.mxu0 0.0
  %553 = vmatpush2.msra.mxu0 0.0
  %554 = vmatprep.subr.mxu0 0.0
  %555 = vmatpush2.msra.mxu0 0.0
  %556 = vmatprep.subr.mxu0 0.0
  %557 = vmatpush2.msra.mxu0 0.0
  %558 = vmatprep.subr.mxu0 0.0
  %559 = vmatpush2.msra.mxu0 0.0
  %560 = vmatprep.subr.mxu0 0.0
  %561 = vmatpush2.msra.mxu0 0.0
  %562 = vmatprep.subr.mxu0 0.0
  %563 = vmatpush2.msra.mxu0 0.0
  %564 = vmatprep.subr.mxu0 0.0
  %565 = vmatpush2.msra.mxu0 0.0
  %566 = vmatprep.subr.mxu0 0.0
  %567 = vmatpush2.msra.mxu0 0.0
  %568 = vmatprep.subr.mxu0 0.0
  %569 = vmatpush2.msra.mxu0 0.0
  %570 = vmatprep.subr.mxu0 0.0
  %571 = vmatpush2.msra.mxu0 0.0
  %572 = vmatprep.subr.mxu0 0.0
  %573 = vmatpush2.msra.mxu0 0.0
  %574 = vmatprep.subr.mxu0 0.0
  %575 = vmatpush2.msra.mxu0 0.0
  %576 = vmatprep.subr.mxu0 0.0
  %577 = vmatpush2.msra.mxu0 0.0
  %578 = vmatprep.subr.mxu0 0.0
  %579 = vmatpush2.msra.mxu0 0.0
  %580 = vmatprep.subr.mxu0 0.0
  %581 = vmatpush2.msra.mxu0 0.0
  %582 = vmatprep.mubr.f32.mxu0 0.0
  %583 = vmatmul.mubr.f32.gmra.mxu0 %v513
  %v584 = vpop.f32.mrf.mxu0
  %v585 = vadd.f32 %v508, %v584
  %v586 = vpop.f32.mrf.mxu0
  %587 = vdwg.mxu0
  %v588 = vld [vmem:[%s11] sm:$0x1]
  %v590 = vlaneseq
  %v591 = vshrl.u32 %v590, 7
  %v592 = vsub.s32 0, %v591
  %v593 = vrot.slane %v588, %v592
  %v595 = vadd.f32 %v585, %v593
  %v596 = vmax.f32 %v595, 0.0
  %v597 = vld [vmem:[%s12] sm:$0xff]
  %v598 = vld [vmem:[%s12 + $0x8] sm:$0xff]
  %v599 = vld [vmem:[%s12 + $0x10] sm:$0xff]
  %v600 = vld [vmem:[%s12 + $0x18] sm:$0xff]
  %v601 = vld [vmem:[%s12 + $0x20] sm:$0xff]
  %v602 = vld [vmem:[%s12 + $0x28] sm:$0x7f]
  %v603 = vld [vmem:[%s13] sm:$0xff]
  %v604 = vld [vmem:[%s13 + $0x8] sm:$0xff]
  %v605 = vld [vmem:[%s13 + $0x10] sm:$0xff]
  %v606 = vld [vmem:[%s13 + $0x18] sm:$0xff]
  %v607 = vld [vmem:[%s13 + $0x20] sm:$0xff]
  %v608 = vld [vmem:[%s13 + $0x28] sm:$0xff]
  %v609 = vld [vmem:[%s13 + $0x30] sm:$0x3]
  %vm610 = vcmask 408576
  %v612 = vsel %vm610, %v334, 0
  %vm614 = vcmask 1041408
  %v616 = vsel %vm614, %v609, 0
  %618 = vmatprep.subr.mxu0 0.0
  %619 = vmatpush1.msra.mxu0 0.0
  %620 = vmatprep.subr.mxu0 0.0
  %621 = vmatpush1.msra.mxu0 0.0
  %622 = vmatprep.subr.mxu0 0.0
  %623 = vmatpush1.msra.mxu0 0.0
  %624 = vmatprep.subr.mxu0 0.0
  %625 = vmatpush1.msra.mxu0 0.0
  %626 = vmatprep.subr.mxu0 0.0
  %627 = vmatpush1.msra.mxu0 0.0
  %628 = vmatprep.subr.mxu0 0.0
  %629 = vmatpush1.msra.mxu0 0.0
  %630 = vmatprep.subr.mxu0 0.0
  %631 = vmatpush1.msra.mxu0 0.0
  %632 = vmatprep.subr.mxu0 0.0
  %633 = vmatpush1.msra.mxu0 0.0
  %634 = vmatprep.subr.mxu0 0.0
  %635 = vmatpush1.msra.mxu0 0.0
  %636 = vmatprep.subr.mxu0 0.0
  %637 = vmatpush1.msra.mxu0 %v616
  %638 = vmatprep.subr.mxu0 0.0
  %639 = vmatpush1.msra.mxu0 %v608
  %640 = vmatprep.subr.mxu0 0.0
  %641 = vmatpush1.msra.mxu0 %v607
  %642 = vmatprep.subr.mxu0 0.0
  %643 = vmatpush1.msra.mxu0 %v606
  %644 = vmatprep.subr.mxu0 0.0
  %645 = vmatpush1.msra.mxu0 %v605
  %646 = vmatprep.subr.mxu0 0.0
  %647 = vmatpush1.msra.mxu0 %v604
  %648 = vmatprep.subr.mxu0 0.0
  %649 = vmatpush1.msra.mxu0 %v603
  %650 = vmatprep.subr.mxu0 0.0
  %651 = vmatpush2.msra.mxu0 0.0
  %652 = vmatprep.subr.mxu0 0.0
  %653 = vmatpush2.msra.mxu0 0.0
  %654 = vmatprep.subr.mxu0 0.0
  %655 = vmatpush2.msra.mxu0 0.0
  %656 = vmatprep.subr.mxu0 0.0
  %657 = vmatpush2.msra.mxu0 0.0
  %658 = vmatprep.subr.mxu0 0.0
  %659 = vmatpush2.msra.mxu0 0.0
  %660 = vmatprep.subr.mxu0 0.0
  %661 = vmatpush2.msra.mxu0 0.0
  %662 = vmatprep.subr.mxu0 0.0
  %663 = vmatpush2.msra.mxu0 0.0
  %664 = vmatprep.subr.mxu0 0.0
  %665 = vmatpush2.msra.mxu0 0.0
  %666 = vmatprep.subr.mxu0 0.0
  %667 = vmatpush2.msra.mxu0 0.0
  %668 = vmatprep.subr.mxu0 0.0
  %669 = vmatpush2.msra.mxu0 0.0
  %670 = vmatprep.subr.mxu0 0.0
  %671 = vmatpush2.msra.mxu0 0.0
  %672 = vmatprep.subr.mxu0 0.0
  %673 = vmatpush2.msra.mxu0 0.0
  %674 = vmatprep.subr.mxu0 0.0
  %675 = vmatpush2.msra.mxu0 0.0
  %676 = vmatprep.subr.mxu0 0.0
  %677 = vmatpush2.msra.mxu0 0.0
  %678 = vmatprep.subr.mxu0 0.0
  %679 = vmatpush2.msra.mxu0 0.0
  %680 = vmatprep.subr.mxu0 0.0
  %681 = vmatpush2.msra.mxu0 0.0
  %682 = vmatprep.mubr.f32.mxu0 0.0
  %683 = vmatmul.mubr.f32.gmra.mxu0 %v612
  %v684 = vpop.f32.mrf.mxu0
  %v685 = vadd.f32 0.0, %v684
  %v686 = vpop.f32.mrf.mxu0
  %687 = vdwg.mxu0
  %vm688 = vcmask 384000
  %v690 = vsel %vm688, %v596, 0
  %vm692 = vcmask 1046528
  %v694 = vsel %vm692, %v602, 0
  %696 = vmatprep.subr.mxu0 0.0
  %697 = vmatpush1.msra.mxu0 0.0
  %698 = vmatprep.subr.mxu0 0.0
  %699 = vmatpush1.msra.mxu0 0.0
  %700 = vmatprep.subr.mxu0 0.0
  %701 = vmatpush1.msra.mxu0 0.0
  %702 = vmatprep.subr.mxu0 0.0
  %703 = vmatpush1.msra.mxu0 0.0
  %704 = vmatprep.subr.mxu0 0.0
  %705 = vmatpush1.msra.mxu0 0.0
  %706 = vmatprep.subr.mxu0 0.0
  %707 = vmatpush1.msra.mxu0 0.0
  %708 = vmatprep.subr.mxu0 0.0
  %709 = vmatpush1.msra.mxu0 0.0
  %710 = vmatprep.subr.mxu0 0.0
  %711 = vmatpush1.msra.mxu0 0.0
  %712 = vmatprep.subr.mxu0 0.0
  %713 = vmatpush1.msra.mxu0 0.0
  %714 = vmatprep.subr.mxu0 0.0
  %715 = vmatpush1.msra.mxu0 0.0
  %716 = vmatprep.subr.mxu0 0.0
  %717 = vmatpush1.msra.mxu0 %v694
  %718 = vmatprep.subr.mxu0 0.0
  %719 = vmatpush1.msra.mxu0 %v601
  %720 = vmatprep.subr.mxu0 0.0
  %721 = vmatpush1.msra.mxu0 %v600
  %722 = vmatprep.subr.mxu0 0.0
  %723 = vmatpush1.msra.mxu0 %v599
  %724 = vmatprep.subr.mxu0 0.0
  %725 = vmatpush1.msra.mxu0 %v598
  %726 = vmatprep.subr.mxu0 0.0
  %727 = vmatpush1.msra.mxu0 %v597
  %728 = vmatprep.subr.mxu0 0.0
  %729 = vmatpush2.msra.mxu0 0.0
  %730 = vmatprep.subr.mxu0 0.0
  %731 = vmatpush2.msra.mxu0 0.0
  %732 = vmatprep.subr.mxu0 0.0
  %733 = vmatpush2.msra.mxu0 0.0
  %734 = vmatprep.subr.mxu0 0.0
  %735 = vmatpush2.msra.mxu0 0.0
  %736 = vmatprep.subr.mxu0 0.0
  %737 = vmatpush2.msra.mxu0 0.0
  %738 = vmatprep.subr.mxu0 0.0
  %739 = vmatpush2.msra.mxu0 0.0
  %740 = vmatprep.subr.mxu0 0.0
  %741 = vmatpush2.msra.mxu0 0.0
  %742 = vmatprep.subr.mxu0 0.0
  %743 = vmatpush2.msra.mxu0 0.0
  %744 = vmatprep.subr.mxu0 0.0
  %745 = vmatpush2.msra.mxu0 0.0
  %746 = vmatprep.subr.mxu0 0.0
  %747 = vmatpush2.msra.mxu0 0.0
  %748 = vmatprep.subr.mxu0 0.0
  %749 = vmatpush2.msra.mxu0 0.0
  %750 = vmatprep.subr.mxu0 0.0
  %751 = vmatpush2.msra.mxu0 0.0
  %752 = vmatprep.subr.mxu0 0.0
  %753 = vmatpush2.msra.mxu0 0.0
  %754 = vmatprep.subr.mxu0 0.0
  %755 = vmatpush2.msra.mxu0 0.0
  %756 = vmatprep.subr.mxu0 0.0
  %757 = vmatpush2.msra.mxu0 0.0
  %758 = vmatprep.subr.mxu0 0.0
  %759 = vmatpush2.msra.mxu0 0.0
  %760 = vmatprep.mubr.f32.mxu0 0.0
  %761 = vmatmul.mubr.f32.gmra.mxu0 %v690
  %v762 = vpop.f32.mrf.mxu0
  %v763 = vadd.f32 %v685, %v762
  %v764 = vpop.f32.mrf.mxu0
  %765 = vdwg.mxu0
  %v766 = vld [vmem:[%s14] sm:$0x1]
  %v768 = vlaneseq
  %v769 = vshrl.u32 %v768, 7
  %v770 = vsub.s32 0, %v769
  %v771 = vrot.slane %v766, %v770
  %v773 = vadd.f32 %v763, %v771
  %v774 = vmax.f32 %v773, 0.0
  %v775 = vld [vmem:[%s15] sm:$0xff]
  %v776 = vld [vmem:[%s15 + $0x8] sm:$0xff]
  %v777 = vld [vmem:[%s15 + $0x10] sm:$0xff]
  %v778 = vld [vmem:[%s15 + $0x18] sm:$0xff]
  %v779 = vld [vmem:[%s15 + $0x20] sm:$0xff]
  %v780 = vld [vmem:[%s15 + $0x28] sm:$0xff]
  %v781 = vld [vmem:[%s15 + $0x30] sm:$0xff]
  %v782 = vld [vmem:[%s15 + $0x38] sm:$0x3]
  %v783 = vld [vmem:[%s16] sm:$0x1]
  %v785 = vlaneseq
  %v786 = vshrl.u32 %v785, 7
  %v787 = vsub.s32 0, %v786
  %v788 = vrot.slane %v783, %v787
  %vm790 = vcmask 474112
  %v792 = vsel %vm790, %v774, 0
  %v795 = vsel %vm614, %v782, 0
  %797 = vmatprep.subr.mxu0 0.0
  %798 = vmatpush1.msra.mxu0 0.0
  %799 = vmatprep.subr.mxu0 0.0
  %800 = vmatpush1.msra.mxu0 0.0
  %801 = vmatprep.subr.mxu0 0.0
  %802 = vmatpush1.msra.mxu0 0.0
  %803 = vmatprep.subr.mxu0 0.0
  %804 = vmatpush1.msra.mxu0 0.0
  %805 = vmatprep.subr.mxu0 0.0
  %806 = vmatpush1.msra.mxu0 0.0
  %807 = vmatprep.subr.mxu0 0.0
  %808 = vmatpush1.msra.mxu0 0.0
  %809 = vmatprep.subr.mxu0 0.0
  %810 = vmatpush1.msra.mxu0 0.0
  %811 = vmatprep.subr.mxu0 0.0
  %812 = vmatpush1.msra.mxu0 0.0
  %813 = vmatprep.subr.mxu0 0.0
  %814 = vmatpush1.msra.mxu0 %v795
  %815 = vmatprep.subr.mxu0 0.0
  %816 = vmatpush1.msra.mxu0 %v781
  %817 = vmatprep.subr.mxu0 0.0
  %818 = vmatpush1.msra.mxu0 %v780
  %819 = vmatprep.subr.mxu0 0.0
  %820 = vmatpush1.msra.mxu0 %v779
  %821 = vmatprep.subr.mxu0 0.0
  %822 = vmatpush1.msra.mxu0 %v778
  %823 = vmatprep.subr.mxu0 0.0
  %824 = vmatpush1.msra.mxu0 %v777
  %825 = vmatprep.subr.mxu0 0.0
  %826 = vmatpush1.msra.mxu0 %v776
  %827 = vmatprep.subr.mxu0 0.0
  %828 = vmatpush1.msra.mxu0 %v775
  %829 = vmatprep.subr.mxu0 0.0
  %830 = vmatpush2.msra.mxu0 0.0
  %831 = vmatprep.subr.mxu0 0.0
  %832 = vmatpush2.msra.mxu0 0.0
  %833 = vmatprep.subr.mxu0 0.0
  %834 = vmatpush2.msra.mxu0 0.0
  %835 = vmatprep.subr.mxu0 0.0
  %836 = vmatpush2.msra.mxu0 0.0
  %837 = vmatprep.subr.mxu0 0.0
  %838 = vmatpush2.msra.mxu0 0.0
  %839 = vmatprep.subr.mxu0 0.0
  %840 = vmatpush2.msra.mxu0 0.0
  %841 = vmatprep.subr.mxu0 0.0
  %842 = vmatpush2.msra.mxu0 0.0
  %843 = vmatprep.subr.mxu0 0.0
  %844 = vmatpush2.msra.mxu0 0.0
  %845 = vmatprep.subr.mxu0 0.0
  %846 = vmatpush2.msra.mxu0 0.0
  %847 = vmatprep.subr.mxu0 0.0
  %848 = vmatpush2.msra.mxu0 0.0
  %849 = vmatprep.subr.mxu0 0.0
  %850 = vmatpush2.msra.mxu0 0.0
  %851 = vmatprep.subr.mxu0 0.0
  %852 = vmatpush2.msra.mxu0 0.0
  %853 = vmatprep.subr.mxu0 0.0
  %854 = vmatpush2.msra.mxu0 0.0
  %855 = vmatprep.subr.mxu0 0.0
  %856 = vmatpush2.msra.mxu0 0.0
  %857 = vmatprep.subr.mxu0 0.0
  %858 = vmatpush2.msra.mxu0 0.0
  %859 = vmatprep.subr.mxu0 0.0
  %860 = vmatpush2.msra.mxu0 0.0
  %861 = vmatprep.mubr.f32.mxu0 0.0
  %862 = vmatmul.mubr.f32.gmra.mxu0 %v792
  %v863 = vpop.f32.mrf.mxu0
  %v864 = vadd.f32 %v788, %v863
  %v865 = vpop.f32.mrf.mxu0
  %866 = vdwg.mxu0
  %v867 = vmax.f32 %v864, 0.0
  %v868 = vld [vmem:[%s17] sm:$0xff]
  %v869 = vld [vmem:[%s17 + $0x8] sm:$0xff]
  %v870 = vld [vmem:[%s17 + $0x10] sm:$0xff]
  %v871 = vld [vmem:[%s17 + $0x18] sm:$0x1f]
  %v872 = vld [vmem:[#allocation2] sm:$0x1]
  %v874 = vlaneseq
  %v875 = vshrl.u32 %v874, 7
  %v876 = vsub.s32 0, %v875
  %v877 = vrot.slane %v872, %v876
  %vm879 = vcmask 236544
  %v881 = vsel %vm879, %v867, 0
  %vm883 = vcmask 1044480
  %v885 = vsel %vm883, %v871, 0
  %887 = vmatprep.subr.mxu0 0.0
  %888 = vmatpush1.msra.mxu0 0.0
  %889 = vmatprep.subr.mxu0 0.0
  %890 = vmatpush1.msra.mxu0 0.0
  %891 = vmatprep.subr.mxu0 0.0
  %892 = vmatpush1.msra.mxu0 0.0
  %893 = vmatprep.subr.mxu0 0.0
  %894 = vmatpush1.msra.mxu0 0.0
  %895 = vmatprep.subr.mxu0 0.0
  %896 = vmatpush1.msra.mxu0 0.0
  %897 = vmatprep.subr.mxu0 0.0
  %898 = vmatpush1.msra.mxu0 0.0
  %899 = vmatprep.subr.mxu0 0.0
  %900 = vmatpush1.msra.mxu0 0.0
  %901 = vmatprep.subr.mxu0 0.0
  %902 = vmatpush1.msra.mxu0 0.0
  %903 = vmatprep.subr.mxu0 0.0
  %904 = vmatpush1.msra.mxu0 0.0
  %905 = vmatprep.subr.mxu0 0.0
  %906 = vmatpush1.msra.mxu0 0.0
  %907 = vmatprep.subr.mxu0 0.0
  %908 = vmatpush1.msra.mxu0 0.0
  %909 = vmatprep.subr.mxu0 0.0
  %910 = vmatpush1.msra.mxu0 0.0
  %911 = vmatprep.subr.mxu0 0.0
  %912 = vmatpush1.msra.mxu0 %v885
  %913 = vmatprep.subr.mxu0 0.0
  %914 = vmatpush1.msra.mxu0 %v870
  %915 = vmatprep.subr.mxu0 0.0
  %916 = vmatpush1.msra.mxu0 %v869
  %917 = vmatprep.subr.mxu0 0.0
  %918 = vmatpush1.msra.mxu0 %v868
  %919 = vmatprep.subr.mxu0 0.0
  %920 = vmatpush2.msra.mxu0 0.0
  %921 = vmatprep.subr.mxu0 0.0
  %922 = vmatpush2.msra.mxu0 0.0
  %923 = vmatprep.subr.mxu0 0.0
  %924 = vmatpush2.msra.mxu0 0.0
  %925 = vmatprep.subr.mxu0 0.0
  %926 = vmatpush2.msra.mxu0 0.0
  %927 = vmatprep.subr.mxu0 0.0
  %928 = vmatpush2.msra.mxu0 0.0
  %929 = vmatprep.subr.mxu0 0.0
  %930 = vmatpush2.msra.mxu0 0.0
  %931 = vmatprep.subr.mxu0 0.0
  %932 = vmatpush2.msra.mxu0 0.0
  %933 = vmatprep.subr.mxu0 0.0
  %934 = vmatpush2.msra.mxu0 0.0
  %935 = vmatprep.subr.mxu0 0.0
  %936 = vmatpush2.msra.mxu0 0.0
  %937 = vmatprep.subr.mxu0 0.0
  %938 = vmatpush2.msra.mxu0 0.0
  %939 = vmatprep.subr.mxu0 0.0
  %940 = vmatpush2.msra.mxu0 0.0
  %941 = vmatprep.subr.mxu0 0.0
  %942 = vmatpush2.msra.mxu0 0.0
  %943 = vmatprep.subr.mxu0 0.0
  %944 = vmatpush2.msra.mxu0 0.0
  %945 = vmatprep.subr.mxu0 0.0
  %946 = vmatpush2.msra.mxu0 0.0
  %947 = vmatprep.subr.mxu0 0.0
  %948 = vmatpush2.msra.mxu0 0.0
  %949 = vmatprep.subr.mxu0 0.0
  %950 = vmatpush2.msra.mxu0 0.0
  %951 = vmatprep.mubr.f32.mxu0 0.0
  %952 = vmatmul.mubr.f32.gmra.mxu0 %v881
  %v953 = vpop.f32.mrf.mxu0
  %v954 = vadd.f32 %v877, %v953
  %v955 = vpop.f32.mrf.mxu0
  %956 = vdwg.mxu0
  %v957 = vxor.u32 %v954, 2147483648
  %v958 = vmul.f32 %v957, 1.442695
  %v959 = vpow.pop %v958
  %v960 = vadd.f32 %v959, 1.0
  %v961 = vrcp.pop %v960
  %v962 = vmul.f32 1.0, %v961
  %vm963 = vcmask 7168
  %964 = vst.msk [vmem:[%s19] sm:$0xff] %vm963, %v962
  // Predicated region
  $region78: #{tpu_custom_call.1} parent=0 // pred_check
    _
  $region79: #{tpu_custom_call.1} parent=0 // pred_check_branch
    %966 = sbr.rel (0) target = $region81
  $region80: #{tpu_custom_call.1} parent=0 // pred_region
    _
  $region81: #{tpu_custom_call.1} parent=0 // pred_fallthru
    _
  // Predicated region
  $region82: #{tpu_custom_call.1} parent=0 // pred_check
    _
  $region83: #{tpu_custom_call.1} parent=0 // pred_check_branch
    %968 = sbr.rel (0) target = $region85
  $region84: #{tpu_custom_call.1} parent=0 // pred_region
    _
  $region85: #{tpu_custom_call.1} parent=0 // pred_fallthru
    _

</llo_original>
